<compile_context>
chip_gen: v5e
topology: v5e:2x2
jax: 0.10.0
libtpu: 0.0.40
codegen_flags: <defaults>
</compile_context>

<pallas_src>
import functools

import jax
import jax.numpy as jnp
from jax.experimental import pallas as pl
from jax.experimental.pallas import tpu as pltpu

EPS = 1e-5


def _round_up(n, m):
    return ((n + m - 1) // m) * m


def concat_squash_kernel(din, dc, r1, r2, n_hid, dim_out,
                         x_ref, c_ref, slab_ref, out_ref):
    """Single-block fused forward.

    Slab row layout (all f32, n_hid columns):
      rows [0, din)         : x-block of the fused first-layer weight
      rows [r1, r1+dc)      : c-block of the fused first-layer weight
      rows [r2, r2+n_hid)   : fused (block-diagonal) second-layer weight
      row  r2+n_hid         : fused BN gamma
      row  r2+n_hid+1       : fused BN beta
      row  r2+n_hid+2       : fused second-layer bias  [b2 | bs2 | bb2 | 0]

    Fused hidden columns:  [x-branch(din) | scale-branch(dout) | bias-branch(dout) | pad]
    Fused output  columns: [h(dout)       | scale_pre(dout)    | bias(dout)        | pad]
    """
    f32 = jnp.float32
    vrow = r2 + n_hid

    w1x = slab_ref[0:din, :]
    w1c = slab_ref[r1:r1 + dc, :]
    w2 = slab_ref[r2:r2 + n_hid, :]
    gamma = slab_ref[vrow:vrow + 1, :]
    beta = slab_ref[vrow + 1:vrow + 2, :]
    bias2 = slab_ref[vrow + 2:vrow + 3, :]

    # ---- fused first Linear over all three branches (pre-BN biases dropped:
    # they cancel exactly in training-mode BatchNorm). Two independent MXU dots
    # accumulating into one hidden slab.
    h = (jnp.dot(x_ref[...], w1x, preferred_element_type=f32) +
         jnp.dot(c_ref[...], w1c, preferred_element_type=f32))

    # ---- one training-mode BatchNorm1d (biased batch stats) + ReLU over all
    # fused columns.  Single-pass moments, affine folded into one FMA.
    inv_n = 1.0 / h.shape[0]
    mu = jnp.sum(h, axis=0, keepdims=True) * inv_n
    ms = jnp.sum(h * h, axis=0, keepdims=True) * inv_n
    var = jnp.maximum(ms - mu * mu, 0.0)
    bn_scale = gamma * jax.lax.rsqrt(var + EPS)
    bn_shift = beta - mu * bn_scale
    h = jnp.maximum(h * bn_scale + bn_shift, 0.0)

    # ---- fused second Linear (block-diagonal): one MXU dot for all branches.
    y = jnp.dot(h, w2, preferred_element_type=f32) + bias2

    hy = y[:, 0:dim_out]                 # layer(x)
    sc = y[:, dim_out:2 * dim_out]       # pre-exp scale
    bi = y[:, 2 * dim_out:3 * dim_out]   # bias
    # exp only on the scale columns: no inf/NaN scratch lanes, minimal EUP.
    out_ref[...] = (hy * jnp.exp(sc) + bi).astype(out_ref.dtype)


def pack_params(p):
    """One-time host-side repack of the PyTorch-style parameters into one slab.

    Fuses the x/scale/bias branches block-diagonally, drops the BN-cancelled
    pre-BN biases, and stacks the per-column vectors (gamma/beta/second bias)
    as trailing rows.  Returns (slab, meta) where meta holds the static layout.
    """
    f32 = jnp.float32
    din = p["w1"].shape[0]
    dout = p["w2"].shape[1]
    dc = p["ws1"].shape[0]

    r1 = _round_up(din, 8)            # sublane-aligned row offset of the c-block of W1
    r2 = _round_up(r1 + dc, 8)        # sublane-aligned row offset of fused W2
    h_true = din + 2 * dout           # true fused hidden width
    width = _round_up(max(h_true, 3 * dout), 8)

    # Fused first-layer weight (block-diagonal across x / scale / bias branches).
    w1f = jnp.zeros((r2, width), f32)
    w1f = w1f.at[0:din, 0:din].set(p["w1"])
    w1f = w1f.at[r1:r1 + dc, din:din + dout].set(p["ws1"])
    w1f = w1f.at[r1:r1 + dc, din + dout:din + 2 * dout].set(p["wb1"])

    # Fused second-layer weight (block-diagonal); output cols = [h | scale | bias | pad].
    w2f = jnp.zeros((width, width), f32)
    w2f = w2f.at[0:din, 0:dout].set(p["w2"])
    w2f = w2f.at[din:din + dout, dout:2 * dout].set(p["ws2"])
    w2f = w2f.at[din + dout:din + 2 * dout, 2 * dout:3 * dout].set(p["wb2"])

    # Per-column vector rows: [gamma; beta; second-layer bias].
    vec = jnp.zeros((3, width), f32)
    vec = vec.at[0, 0:din].set(p["g1"][0])
    vec = vec.at[0, din:din + dout].set(p["gs1"][0])
    vec = vec.at[0, din + dout:din + 2 * dout].set(p["gb1"][0])
    vec = vec.at[1, 0:din].set(p["be1"][0])
    vec = vec.at[1, din:din + dout].set(p["bes1"][0])
    vec = vec.at[1, din + dout:din + 2 * dout].set(p["beb1"][0])
    vec = vec.at[2, 0:dout].set(p["b2"][0])
    vec = vec.at[2, dout:2 * dout].set(p["bs2"][0])
    vec = vec.at[2, 2 * dout:3 * dout].set(p["bb2"][0])

    slab = jnp.concatenate([w1f, w2f, vec], axis=0)
    meta = dict(din=din, dc=dc, dim_out=dout, r1=r1, r2=r2, width=width)
    return slab, meta


def concat_squash_linear(x, c, slab, meta):
    """x: [B, dim_in], c: [B, dim_c], (slab, meta) from pack_params.

    Returns [B, dim_out] float32 — emitted directly by the kernel (no wrapper slice).
    """
    B = x.shape[0]
    din, dc = meta["din"], meta["dc"]
    r1, r2 = meta["r1"], meta["r2"]
    width, dout = meta["width"], meta["dim_out"]
    assert x.shape[1] == din and c.shape[1] == dc and c.shape[0] == B

    flops = 2 * B * (din + dc + width) * width
    transcendentals = B * dout + width
    bytes_accessed = 4 * (int(x.size) + int(c.size) + int(slab.size) + B * dout)
    cost = pl.CostEstimate(flops=int(flops), transcendentals=int(transcendentals),
                           bytes_accessed=int(bytes_accessed))

    vmem = pl.BlockSpec(memory_space=pltpu.MemorySpace.VMEM)
    return pl.pallas_call(
        functools.partial(concat_squash_kernel, din, dc, r1, r2, width, dout),
        out_shape=jax.ShapeDtypeStruct((B, dout), jnp.float32),
        in_specs=[vmem, vmem, vmem],
        out_specs=vmem,
        cost_estimate=cost,
    )(x.astype(jnp.float32), c.astype(jnp.float32), slab)


def init_params(key, dim_in, dim_out, dim_c):
    """Deterministic init mimicking PyTorch Linear (U(+-1/sqrt(fan_in))) and
    BatchNorm1d (gamma=1, beta=0). Weights stored [fan_in, fan_out]."""
    def lin(k, fi, fo):
        kw, kb = jax.random.split(k)
        bound = 1.0 / jnp.sqrt(fi)
        w = jax.random.uniform(kw, (fi, fo), jnp.float32, -bound, bound)
        b = jax.random.uniform(kb, (1, fo), jnp.float32, -bound, bound)
        return w, b

    ks = jax.random.split(key, 6)
    p = {}
    # layer mlp
    p["w1"], p["b1"] = lin(ks[0], dim_in, dim_in)
    p["g1"], p["be1"] = jnp.ones((1, dim_in), jnp.float32), jnp.zeros((1, dim_in), jnp.float32)
    p["w2"], p["b2"] = lin(ks[1], dim_in, dim_out)
    # affine.scale mlp
    p["ws1"], p["bs1"] = lin(ks[2], dim_c, dim_out)
    p["gs1"], p["bes1"] = jnp.ones((1, dim_out), jnp.float32), jnp.zeros((1, dim_out), jnp.float32)
    p["ws2"], p["bs2"] = lin(ks[3], dim_out, dim_out)
    # affine.bias mlp
    p["wb1"], p["bb1"] = lin(ks[4], dim_c, dim_out)
    p["gb1"], p["beb1"] = jnp.ones((1, dim_out), jnp.float32), jnp.zeros((1, dim_out), jnp.float32)
    p["wb2"], p["bb2"] = lin(ks[5], dim_out, dim_out)
    return p


def reference_forward(x, c, p):
    """Pure-JAX reference: unfused, with all biases, two-pass BN variance
    (exactly mirrors the PyTorch module in training mode)."""
    def bn(h, g, b):
        mu = jnp.mean(h, axis=0, keepdims=True)
        var = jnp.mean((h - mu) ** 2, axis=0, keepdims=True)
        return (h - mu) * jax.lax.rsqrt(var + EPS) * g + b

    h = jnp.maximum(bn(x @ p["w1"] + p["b1"], p["g1"], p["be1"]), 0.0) @ p["w2"] + p["b2"]
    s = jnp.maximum(bn(c @ p["ws1"] + p["bs1"], p["gs1"], p["bes1"]), 0.0) @ p["ws2"] + p["bs2"]
    b = jnp.maximum(bn(c @ p["wb1"] + p["bb1"], p["gb1"], p["beb1"]), 0.0) @ p["wb2"] + p["bb2"]
    return h * jnp.exp(s) + b


if __name__ == "__main__":
    B, dim_in, dim_out, dim_c = 8, 32, 64, 16

    key = jax.random.PRNGKey(0)
    kx, kc, kp = jax.random.split(key, 3)
    x = jax.random.normal(kx, (B, dim_in), jnp.float32)
    c = jax.random.normal(kc, (B, dim_c), jnp.float32)
    params = init_params(kp, dim_in, dim_out, dim_c)
    ref = reference_forward(x, c, params)

    slab, meta = pack_params(params)
    out = jax.block_until_ready(concat_squash_linear(x, c, slab, meta))
    assert out.shape == (B, dim_out)
    assert jnp.allclose(out, ref, atol=1e-4, rtol=1e-4), "kernel mismatch vs reference"

    print("KERNEL_OK")
</pallas_src>

<mosaic_0001>
module attributes {stable_mosaic.version = 11 : i64} {
  func.func @concat_squash_kernel(%arg0: memref<8x32xf32, #tpu.memory_space<vmem>>, %arg1: memref<8x16xf32, #tpu.memory_space<vmem>>, %arg2: memref<243x192xf32, #tpu.memory_space<vmem>>, %arg3: memref<8x64xf32, #tpu.memory_space<vmem>>) attributes {dimension_semantics = [], scalar_prefetch = 0 : i64, scratch_operands = 0 : i64, tpu.core_type = #tpu.core_type<tc>} {
    %c0 = arith.constant 0 : index
    %c0_0 = arith.constant 0 : index
    %0 = vector.load %arg2[%c0, %c0_0] : memref<243x192xf32, #tpu.memory_space<vmem>>, vector<32x192xf32>
    %c32 = arith.constant 32 : index
    %c0_1 = arith.constant 0 : index
    %1 = vector.load %arg2[%c32, %c0_1] : memref<243x192xf32, #tpu.memory_space<vmem>>, vector<16x192xf32>
    %c48 = arith.constant 48 : index
    %c0_2 = arith.constant 0 : index
    %2 = vector.load %arg2[%c48, %c0_2] : memref<243x192xf32, #tpu.memory_space<vmem>>, vector<192x192xf32>
    %c240 = arith.constant 240 : index
    %c0_3 = arith.constant 0 : index
    %3 = vector.load %arg2[%c240, %c0_3] : memref<243x192xf32, #tpu.memory_space<vmem>>, vector<1x192xf32>
    %c241 = arith.constant 241 : index
    %c0_4 = arith.constant 0 : index
    %4 = vector.load %arg2[%c241, %c0_4] : memref<243x192xf32, #tpu.memory_space<vmem>>, vector<1x192xf32>
    %c242 = arith.constant 242 : index
    %c0_5 = arith.constant 0 : index
    %5 = vector.load %arg2[%c242, %c0_5] : memref<243x192xf32, #tpu.memory_space<vmem>>, vector<1x192xf32>
    %c0_6 = arith.constant 0 : index
    %c0_7 = arith.constant 0 : index
    %6 = vector.load %arg0[%c0_6, %c0_7] : memref<8x32xf32, #tpu.memory_space<vmem>>, vector<8x32xf32>
    %cst = arith.constant dense<0.000000e+00> : vector<8x192xf32>
    %7 = tpu.matmul %6, %0, %cst {dimension_numbers = #tpu.dot_dimension_numbers<[1], [0], [0], [1], [0, 0, 1, 1], [], []>} : vector<8x32xf32>, vector<32x192xf32>, vector<8x192xf32> -> vector<8x192xf32>
    %c0_8 = arith.constant 0 : index
    %c0_9 = arith.constant 0 : index
    %8 = vector.load %arg1[%c0_8, %c0_9] : memref<8x16xf32, #tpu.memory_space<vmem>>, vector<8x16xf32>
    %cst_10 = arith.constant dense<0.000000e+00> : vector<8x192xf32>
    %9 = tpu.matmul %8, %1, %cst_10 {dimension_numbers = #tpu.dot_dimension_numbers<[1], [0], [0], [1], [0, 0, 1, 1], [], []>} : vector<8x16xf32>, vector<16x192xf32>, vector<8x192xf32> -> vector<8x192xf32>
    %10 = arith.addf %7, %9 : vector<8x192xf32>
    %cst_11 = arith.constant dense<0.000000e+00> : vector<192xf32>
    %11 = vector.multi_reduction <add>, %10, %cst_11 [0] : vector<8x192xf32> to vector<192xf32>
    %12 = vector.shape_cast %11 : vector<192xf32> to vector<1x192xf32>
    %cst_12 = arith.constant 1.250000e-01 : f32
    %13 = vector.broadcast %cst_12 : f32 to vector<1x192xf32>
    %14 = arith.mulf %12, %13 : vector<1x192xf32>
    %15 = arith.mulf %10, %10 : vector<8x192xf32>
    %cst_13 = arith.constant dense<0.000000e+00> : vector<192xf32>
    %16 = vector.multi_reduction <add>, %15, %cst_13 [0] : vector<8x192xf32> to vector<192xf32>
    %17 = vector.shape_cast %16 : vector<192xf32> to vector<1x192xf32>
    %cst_14 = arith.constant 1.250000e-01 : f32
    %18 = vector.broadcast %cst_14 : f32 to vector<1x192xf32>
    %19 = arith.mulf %17, %18 : vector<1x192xf32>
    %20 = arith.mulf %14, %14 : vector<1x192xf32>
    %21 = arith.subf %19, %20 : vector<1x192xf32>
    %cst_15 = arith.constant 0.000000e+00 : f32
    %22 = vector.broadcast %cst_15 : f32 to vector<1x192xf32>
    %23 = arith.maximumf %21, %22 : vector<1x192xf32>
    %cst_16 = arith.constant 9.99999974E-6 : f32
    %24 = vector.broadcast %cst_16 : f32 to vector<1x192xf32>
    %25 = arith.addf %23, %24 : vector<1x192xf32>
    %26 = math.rsqrt %25 : vector<1x192xf32>
    %27 = arith.mulf %3, %26 : vector<1x192xf32>
    %28 = arith.mulf %14, %27 : vector<1x192xf32>
    %29 = arith.subf %4, %28 : vector<1x192xf32>
    %30 = vector.broadcast %27 : vector<1x192xf32> to vector<8x192xf32>
    %31 = arith.mulf %10, %30 : vector<8x192xf32>
    %32 = vector.broadcast %29 : vector<1x192xf32> to vector<8x192xf32>
    %33 = arith.addf %31, %32 : vector<8x192xf32>
    %cst_17 = arith.constant 0.000000e+00 : f32
    %34 = vector.broadcast %cst_17 : f32 to vector<8x192xf32>
    %35 = arith.maximumf %33, %34 : vector<8x192xf32>
    %cst_18 = arith.constant dense<0.000000e+00> : vector<8x192xf32>
    %36 = tpu.matmul %35, %2, %cst_18 {dimension_numbers = #tpu.dot_dimension_numbers<[1], [0], [0], [1], [0, 0, 1, 1], [], []>} : vector<8x192xf32>, vector<192x192xf32>, vector<8x192xf32> -> vector<8x192xf32>
    %37 = vector.broadcast %5 : vector<1x192xf32> to vector<8x192xf32>
    %38 = arith.addf %36, %37 : vector<8x192xf32>
    %39 = vector.extract_strided_slice %38 {offsets = [0, 0], sizes = [8, 64], strides = [1, 1]} : vector<8x192xf32> to vector<8x64xf32>
    %40 = vector.extract_strided_slice %38 {offsets = [0, 64], sizes = [8, 64], strides = [1, 1]} : vector<8x192xf32> to vector<8x64xf32>
    %41 = vector.extract_strided_slice %38 {offsets = [0, 128], sizes = [8, 64], strides = [1, 1]} : vector<8x192xf32> to vector<8x64xf32>
    %42 = math.exp %40 : vector<8x64xf32>
    %43 = arith.mulf %39, %42 : vector<8x64xf32>
    %44 = arith.addf %43, %41 : vector<8x64xf32>
    %c0_19 = arith.constant 0 : index
    %c0_20 = arith.constant 0 : index
    %45 = vector.load %arg3[%c0_19, %c0_20] : memref<8x64xf32, #tpu.memory_space<vmem>>, vector<8x64xf32>
    tpu.vector_store %arg3[%c0_19, %c0_20], %44 {strides = array<i32>} : memref<8x64xf32, #tpu.memory_space<vmem>>, vector<8x64xf32>,
    return
  }
}

</mosaic_0001>

<llo_original>
// kernel: tpu_custom_call.1
$region0: #{tpu_custom_call.1}
  #allocation0 [shape = 'u32[]', space=smem, size = 0x4, offset = 0x4, fixed_abs, tag = 'smem constant byte address 0x4 - core index']
  #allocation1 [shape = 'u32[72,128]{1,0:T(1,128)}', space=vmem, size = 0x9000, scoped, tag = 'internal scratch']
  %s0 = inlined_call_operand.vmem [shape: f32[8,32], index: 0, kind: input, shape index: {}]
  %s1 = inlined_call_operand.vmem [shape: f32[8,16], index: 1, kind: input, shape index: {}]
  %s2 = inlined_call_operand.vmem [shape: f32[243,192], index: 2, kind: input, shape index: {}]
  %s3 = inlined_call_operand.hbm [shape: f32[8,64], index: 3, kind: output, shape index: {}]
  %s4 = sld [smem:[#allocation0]]
  $region22: #{tpu_custom_call.1} parent=0
    _
  %s6 = ssub.s32 1, %s4
  %s7 = scalar_select 0, %s6, %s4
  $region1: #{tpu_custom_call.1} parent=0
    #allocation2 [shape = 'u8[4096]{0}', space=vmem, size = 0x1000, scoped, tag = 'output window, operand 0, single buffered']
    #allocation3 [shape = 's32[1]{0}', space=sflag, size = 0x4, scoped, tag = 'scoped memory for tpu_custom_call.1']
    %8 = vsyncpa [#allocation3], 0
    // Predicated region
    $region2: #{tpu_custom_call.1} parent=1 // pred_check
      _
    $region3: #{tpu_custom_call.1} parent=1 // pred_check_branch
      %10 = sbr.rel (0) target = $region5
    $region4: #{tpu_custom_call.1} parent=1 // pred_region
      _
    $region5: #{tpu_custom_call.1} parent=1 // pred_fallthru
      _
    // Predicated region
    $region6: #{tpu_custom_call.1} parent=1 // pred_check
      _
    $region7: #{tpu_custom_call.1} parent=1 // pred_check_branch
      %12 = sbr.rel (0) target = $region9
    $region8: #{tpu_custom_call.1} parent=1 // pred_region
      _
    $region9: #{tpu_custom_call.1} parent=1 // pred_fallthru
      _
    // Predicated region
    $region10: #{tpu_custom_call.1} parent=1 // pred_check
      _
    $region11: #{tpu_custom_call.1} parent=1 // pred_check_branch
      %14 = sbr.rel (0) target = $region13
    $region12: #{tpu_custom_call.1} parent=1 // pred_region
      _
    $region13: #{tpu_custom_call.1} parent=1 // pred_fallthru
      _
    %v15 = vld [vmem:[%s2] sm:$0xff]
    %v16 = vld [vmem:[%s2 + $0x8] sm:$0xff]
    %v17 = vld [vmem:[%s2 + $0x10] sm:$0xff]
    %v18 = vld [vmem:[%s2 + $0x18] sm:$0xff]
    %v19 = vld [vmem:[%s2 + $0x20] sm:$0xff]
    %v20 = vld [vmem:[%s2 + $0x28] sm:$0xff]
    %v21 = vld [vmem:[%s2 + $0x30] sm:$0xff]
    %v22 = vld [vmem:[%s2 + $0x38] sm:$0xff]
    %v23 = vld [vmem:[%s2 + $0x40] sm:$0xff]
    %v24 = vld [vmem:[%s2 + $0x48] sm:$0xff]
    %v25 = vld [vmem:[%s2 + $0x50] sm:$0xff]
    %v26 = vld [vmem:[%s2 + $0x58] sm:$0xff]
    %v27 = vld [vmem:[%s2 + $0x60] sm:$0xff]
    %v28 = vld [vmem:[%s2 + $0x68] sm:$0xff]
    %v29 = vld [vmem:[%s2 + $0x70] sm:$0xff]
    %v30 = vld [vmem:[%s2 + $0x78] sm:$0xff]
    %v31 = vld [vmem:[%s2 + $0x80] sm:$0xff]
    %v32 = vld [vmem:[%s2 + $0x88] sm:$0xff]
    %v33 = vld [vmem:[%s2 + $0x90] sm:$0xff]
    %v34 = vld [vmem:[%s2 + $0x98] sm:$0xff]
    %v35 = vld [vmem:[%s2 + $0xa0] sm:$0xff]
    %v36 = vld [vmem:[%s2 + $0xa8] sm:$0xff]
    %v37 = vld [vmem:[%s2 + $0xb0] sm:$0xff]
    %v38 = vld [vmem:[%s2 + $0xb8] sm:$0xff]
    %v39 = vld [vmem:[%s2 + $0xc0] sm:$0xff]
    %v40 = vld [vmem:[%s2 + $0xc8] sm:$0xff]
    %v41 = vld [vmem:[%s2 + $0xd0] sm:$0xff]
    %v42 = vld [vmem:[%s2 + $0xd8] sm:$0xff]
    %v43 = vld [vmem:[%s2 + $0xe0] sm:$0xff]
    %v44 = vld [vmem:[%s2 + $0xe8] sm:$0xff]
    %v45 = vld [vmem:[%s2 + $0xf0] sm:$0xff]
    %v46 = vld [vmem:[%s2 + $0xf8] sm:$0xff]
    %v47 = vld [vmem:[%s2 + $0x100] sm:$0xff]
    %v48 = vld [vmem:[%s2 + $0x108] sm:$0xff]
    %v49 = vld [vmem:[%s2 + $0x110] sm:$0xff]
    %v50 = vld [vmem:[%s2 + $0x118] sm:$0xff]
    %v51 = vld [vmem:[%s2 + $0x120] sm:$0xff]
    %v52 = vld [vmem:[%s2 + $0x128] sm:$0xff]
    %v53 = vld [vmem:[%s2 + $0x130] sm:$0xff]
    %v54 = vld [vmem:[%s2 + $0x138] sm:$0xff]
    %v55 = vld [vmem:[%s2 + $0x140] sm:$0xff]
    %v56 = vld [vmem:[%s2 + $0x148] sm:$0xff]
    %v57 = vld [vmem:[%s2 + $0x150] sm:$0xff]
    %v58 = vld [vmem:[%s2 + $0x158] sm:$0xff]
    %v59 = vld [vmem:[%s2 + $0x160] sm:$0xff]
    %v60 = vld [vmem:[%s2 + $0x168] sm:$0xff]
    %v61 = vld [vmem:[%s2 + $0x170] sm:$0xff]
    %v62 = vld [vmem:[%s2 + $0x178] sm:$0xff]
    %v63 = vld [vmem:[%s2 + $0x180] sm:$0xff]
    %v64 = vld [vmem:[%s2 + $0x188] sm:$0xff]
    %v65 = vld [vmem:[%s2 + $0x190] sm:$0xff]
    %v66 = vld [vmem:[%s2 + $0x198] sm:$0xff]
    %v67 = vld [vmem:[%s2 + $0x1a0] sm:$0xff]
    %v68 = vld [vmem:[%s2 + $0x1a8] sm:$0xff]
    %v69 = vld [vmem:[%s2 + $0x1b0] sm:$0xff]
    %v70 = vld [vmem:[%s2 + $0x1b8] sm:$0xff]
    %v71 = vld [vmem:[%s2 + $0x1c0] sm:$0xff]
    %v72 = vld [vmem:[%s2 + $0x1c8] sm:$0xff]
    %v73 = vld [vmem:[%s2 + $0x1d0] sm:$0xff]
    %v74 = vld [vmem:[%s2 + $0x1d8] sm:$0xff]
    %s75 = scalar_lea.vmem %s2, 480
    %v76 = vld [vmem:[%s75] ss:$8 sm:$0x3]
    %s77 = scalar_lea.vmem %s2, 481
    %v78 = vld [vmem:[%s77] ss:$8 sm:$0x3]
    %s79 = scalar_lea.vmem %s2, 482
    %v80 = vld [vmem:[%s79] ss:$8 sm:$0x3]
    %v81 = vld [vmem:[%s0] sm:$0xff]
    %v82 = vld [vmem:[%s1] sm:$0xff]
    %vm83 = vcmask 130048
    %v85 = vsel %vm83, %v82, 0
    %87 = vmatpush.msra.mxu0 0.0
    %88 = vmatpush.msra.mxu0 0.0
    %89 = vmatpush.msra.mxu0 0.0
    %90 = vmatpush.msra.mxu0 0.0
    %91 = vmatpush.msra.mxu0 0.0
    %92 = vmatpush.msra.mxu0 0.0
    %93 = vmatpush.msra.mxu0 0.0
    %94 = vmatpush.msra.mxu0 0.0
    %95 = vmatpush.msra.mxu0 0.0
    %96 = vmatpush.msra.mxu0 0.0
    %97 = vmatpush.msra.mxu0 0.0
    %98 = vmatpush.msra.mxu0 0.0
    %99 = vmatpush.msra.mxu0 0.0
    %100 = vmatpush.msra.mxu0 0.0
    %101 = vmatpush.msra.mxu0 %v25
    %102 = vmatpush.msra.mxu0 %v23
    %103 = vmatmul.f32.gmra.mxu0 %v85
    %v104 = vpop.f32.mrf.mxu0
    %v105 = vadd.f32 0.0, %v104
    %106 = vdwg.mxu0
    %107 = vmatpush.msra.mxu0 0.0
    %108 = vmatpush.msra.mxu0 0.0
    %109 = vmatpush.msra.mxu0 0.0
    %110 = vmatpush.msra.mxu0 0.0
    %111 = vmatpush.msra.mxu0 0.0
    %112 = vmatpush.msra.mxu0 0.0
    %113 = vmatpush.msra.mxu0 0.0
    %114 = vmatpush.msra.mxu0 0.0
    %115 = vmatpush.msra.mxu0 0.0
    %116 = vmatpush.msra.mxu0 0.0
    %117 = vmatpush.msra.mxu0 0.0
    %118 = vmatpush.msra.mxu0 0.0
    %119 = vmatpush.msra.mxu0 0.0
    %120 = vmatpush.msra.mxu0 0.0
    %121 = vmatpush.msra.mxu0 %v26
    %122 = vmatpush.msra.mxu0 %v24
    %123 = vmatmul.f32.gmra.mxu0 %v85
    %v124 = vpop.f32.mrf.mxu0
    %v125 = vadd.f32 0.0, %v124
    %126 = vdwg.mxu0
    %vm127 = vcmask 261120
    %v129 = vsel %vm127, %v81, 0
    %131 = vmatpush.msra.mxu0 0.0
    %132 = vmatpush.msra.mxu0 0.0
    %133 = vmatpush.msra.mxu0 0.0
    %134 = vmatpush.msra.mxu0 0.0
    %135 = vmatpush.msra.mxu0 0.0
    %136 = vmatpush.msra.mxu0 0.0
    %137 = vmatpush.msra.mxu0 0.0
    %138 = vmatpush.msra.mxu0 0.0
    %139 = vmatpush.msra.mxu0 0.0
    %140 = vmatpush.msra.mxu0 0.0
    %141 = vmatpush.msra.mxu0 0.0
    %142 = vmatpush.msra.mxu0 0.0
    %143 = vmatpush.msra.mxu0 %v21
    %144 = vmatpush.msra.mxu0 %v19
    %145 = vmatpush.msra.mxu0 %v17
    %146 = vmatpush.msra.mxu0 %v15
    %147 = vmatmul.f32.gmra.mxu0 %v129
    %v148 = vpop.f32.mrf.mxu0
    %v149 = vadd.f32 %v105, %v148
    %150 = vdwg.mxu0
    %151 = vmatpush.msra.mxu0 0.0
    %152 = vmatpush.msra.mxu0 0.0
    %153 = vmatpush.msra.mxu0 0.0
    %154 = vmatpush.msra.mxu0 0.0
    %155 = vmatpush.msra.mxu0 0.0
    %156 = vmatpush.msra.mxu0 0.0
    %157 = vmatpush.msra.mxu0 0.0
    %158 = vmatpush.msra.mxu0 0.0
    %159 = vmatpush.msra.mxu0 0.0
    %160 = vmatpush.msra.mxu0 0.0
    %161 = vmatpush.msra.mxu0 0.0
    %162 = vmatpush.msra.mxu0 0.0
    %163 = vmatpush.msra.mxu0 %v22
    %164 = vmatpush.msra.mxu0 %v20
    %165 = vmatpush.msra.mxu0 %v18
    %166 = vmatpush.msra.mxu0 %v16
    %167 = vmatmul.f32.gmra.mxu0 %v129
    %v168 = vpop.f32.mrf.mxu0
    %v169 = vadd.f32 %v125, %v168
    %170 = vdwg.mxu0
    %v171 = vrot.slane %v149, 4
    %v172 = vadd.f32 %v149, %v171
    %v173 = vrot.slane %v172, 2
    %v174 = vadd.f32 %v172, %v173
    %v175 = vrot.slane %v174, 1
    %v176 = vadd.f32 %v174, %v175
    %vm177 = vcmask 523264
    %v178 = vsel %vm177, %v169, 0.0
    %v179 = vrot.slane %v178, 4
    %v180 = vadd.f32 %v178, %v179
    %v181 = vrot.slane %v180, 2
    %v182 = vadd.f32 %v180, %v181
    %v183 = vrot.slane %v182, 1
    %v184 = vadd.f32 %v182, %v183
    %v185 = vmul.f32 %v176, 0.125
    %v186 = vmul.f32 %v184, 0.125
    %v187 = vmul.f32 %v149, %v149
    %v188 = vmul.f32 %v169, %v169
    %v189 = vrot.slane %v187, 4
    %v190 = vadd.f32 %v187, %v189
    %v191 = vrot.slane %v190, 2
    %v192 = vadd.f32 %v190, %v191
    %v193 = vrot.slane %v192, 1
    %v194 = vadd.f32 %v192, %v193
    %v195 = vsel %vm177, %v188, 0.0
    %v196 = vrot.slane %v195, 4
    %v197 = vadd.f32 %v195, %v196
    %v198 = vrot.slane %v197, 2
    %v199 = vadd.f32 %v197, %v198
    %v200 = vrot.slane %v199, 1
    %v201 = vadd.f32 %v199, %v200
    %v202 = vmul.f32 %v194, 0.125
    %v203 = vmul.f32 %v201, 0.125
    %v204 = vmul.f32 %v185, %v185
    %v205 = vmul.f32 %v186, %v186
    %v206 = vsub.f32 %v202, %v204
    %v207 = vsub.f32 %v203, %v205
    %v208 = vmax.f32 %v206, 0.0
    %v209 = vmax.f32 %v207, 0.0
    %v210 = vadd.f32 %v208, 1e-05
    %v211 = vadd.f32 %v209, 1e-05
    %v212 = vrsqrt.pop %v210
    %v213 = vmul.f32 %v212, %v210
    %v214 = vmul.f32 %v213, %v212
    %v215 = vmul.f32 0.5, %v214
    %v216 = vsub.f32 1.5, %v215
    %v217 = vmul.f32 %v212, %v216
    %vm218 = vweird.f32 %v210
    %vm219 = vweird.f32 %v212
    %vm220 = vmor %vm218, %vm219
    %v221 = vsel %vm220, %v212, %v217
    %v222 = vrsqrt.pop %v211
    %v223 = vmul.f32 %v222, %v211
    %v224 = vmul.f32 %v223, %v222
    %v225 = vmul.f32 0.5, %v224
    %v226 = vsub.f32 1.5, %v225
    %v227 = vmul.f32 %v222, %v226
    %vm228 = vweird.f32 %v211
    %vm229 = vweird.f32 %v222
    %vm230 = vmor %vm228, %vm229
    %v231 = vsel %vm230, %v222, %v227
    %v234 = vrot.slane %v231, 7
    %vm235 = vcmask 1040384
    %v236 = vsel %vm235, %v221, %v234
    %v238 = vmul.f32 %v76, %v236
    %v240 = vperm.slane %v238, 0
    %v241 = vperm.slane %v238, 1
    %v244 = vmul.f32 %v185, %v240
    %v245 = vmul.f32 %v186, %v241
    %v248 = vrot.slane %v245, 7
    %v249 = vsel %vm235, %v244, %v248
    %v251 = vsub.f32 %v78, %v249
    %v252 = vmul.f32 %v149, %v240
    %v253 = vmul.f32 %v169, %v241
    %v255 = vperm.slane %v251, 0
    %v256 = vperm.slane %v251, 1
    %v259 = vadd.f32 %v252, %v255
    %v260 = vadd.f32 %v253, %v256
    %v261 = vmax.f32 %v259, 0.0
    %v262 = vmax.f32 %v260, 0.0
    %v264 = vperm.slane %v80, 0
    %v265 = vperm.slane %v80, 1
    %v269 = vsel %vm177, %v262, 0
    %271 = vmatpush.msra.mxu0 %v57
    %272 = vmatpush.msra.mxu0 %v55
    %273 = vmatpush.msra.mxu0 %v53
    %274 = vmatpush.msra.mxu0 %v51
    %275 = vmatpush.msra.mxu0 %v49
    %276 = vmatpush.msra.mxu0 %v47
    %277 = vmatpush.msra.mxu0 %v45
    %278 = vmatpush.msra.mxu0 %v43
    %279 = vmatpush.msra.mxu0 %v41
    %280 = vmatpush.msra.mxu0 %v39
    %281 = vmatpush.msra.mxu0 %v37
    %282 = vmatpush.msra.mxu0 %v35
    %283 = vmatpush.msra.mxu0 %v33
    %284 = vmatpush.msra.mxu0 %v31
    %285 = vmatpush.msra.mxu0 %v29
    %286 = vmatpush.msra.mxu0 %v27
    %287 = vmatmul.f32.gmra.mxu0 %v261
    %v288 = vpop.f32.mrf.mxu0
    %v289 = vadd.f32 %v264, %v288
    %290 = vdwg.mxu0
    %291 = vmatpush.msra.mxu0 0.0
    %292 = vmatpush.msra.mxu0 0.0
    %293 = vmatpush.msra.mxu0 0.0
    %294 = vmatpush.msra.mxu0 0.0
    %295 = vmatpush.msra.mxu0 0.0
    %296 = vmatpush.msra.mxu0 0.0
    %297 = vmatpush.msra.mxu0 0.0
    %298 = vmatpush.msra.mxu0 0.0
    %299 = vmatpush.msra.mxu0 %v73
    %300 = vmatpush.msra.mxu0 %v71
    %301 = vmatpush.msra.mxu0 %v69
    %302 = vmatpush.msra.mxu0 %v67
    %303 = vmatpush.msra.mxu0 %v65
    %304 = vmatpush.msra.mxu0 %v63
    %305 = vmatpush.msra.mxu0 %v61
    %306 = vmatpush.msra.mxu0 %v59
    %307 = vmatmul.f32.gmra.mxu0 %v269
    %v308 = vpop.f32.mrf.mxu0
    %v309 = vadd.f32 %v289, %v308
    %310 = vdwg.mxu0
    %311 = vmatpush.msra.mxu0 %v58
    %312 = vmatpush.msra.mxu0 %v56
    %313 = vmatpush.msra.mxu0 %v54
    %314 = vmatpush.msra.mxu0 %v52
    %315 = vmatpush.msra.mxu0 %v50
    %316 = vmatpush.msra.mxu0 %v48
    %317 = vmatpush.msra.mxu0 %v46
    %318 = vmatpush.msra.mxu0 %v44
    %319 = vmatpush.msra.mxu0 %v42
    %320 = vmatpush.msra.mxu0 %v40
    %321 = vmatpush.msra.mxu0 %v38
    %322 = vmatpush.msra.mxu0 %v36
    %323 = vmatpush.msra.mxu0 %v34
    %324 = vmatpush.msra.mxu0 %v32
    %325 = vmatpush.msra.mxu0 %v30
    %326 = vmatpush.msra.mxu0 %v28
    %327 = vmatmul.f32.gmra.mxu0 %v261
    %v328 = vpop.f32.mrf.mxu0
    %v329 = vadd.f32 %v265, %v328
    %330 = vdwg.mxu0
    %331 = vmatpush.msra.mxu0 0.0
    %332 = vmatpush.msra.mxu0 0.0
    %333 = vmatpush.msra.mxu0 0.0
    %334 = vmatpush.msra.mxu0 0.0
    %335 = vmatpush.msra.mxu0 0.0
    %336 = vmatpush.msra.mxu0 0.0
    %337 = vmatpush.msra.mxu0 0.0
    %338 = vmatpush.msra.mxu0 0.0
    %339 = vmatpush.msra.mxu0 %v74
    %340 = vmatpush.msra.mxu0 %v72
    %341 = vmatpush.msra.mxu0 %v70
    %342 = vmatpush.msra.mxu0 %v68
    %343 = vmatpush.msra.mxu0 %v66
    %344 = vmatpush.msra.mxu0 %v64
    %345 = vmatpush.msra.mxu0 %v62
    %346 = vmatpush.msra.mxu0 %v60
    %347 = vmatmul.f32.gmra.mxu0 %v269
    %v348 = vpop.f32.mrf.mxu0
    %v349 = vadd.f32 %v329, %v348
    %350 = vdwg.mxu0
    %v351 = vmul.f32 %v309, 1.442695
    %v352 = vpow.pop %v351
    %354 = vrot.lane.b32.xlu0 %v352, 64
    %v355 = vpop.permute.xlu0 %354
    %v357 = vmul.f32 %v309, %v355
    %v358 = vadd.f32 %v357, %v349
    %359 = vst.msk [vmem:[#allocation2] sm:$0xff] %vm177, %v358
    // Predicated region
    $region14: #{tpu_custom_call.1} parent=1 // pred_check
      _
    $region15: #{tpu_custom_call.1} parent=1 // pred_check_branch
      %361 = sbr.rel (0) target = $region17
    $region16: #{tpu_custom_call.1} parent=1 // pred_region
      %363 = vsyncadd [#allocation3], 0
      %s365 = sshll.u32 [#allocation2], 4
      %s366 = int_to_ptr.vmem [resolvable:$true] %s365
      %s367 = sshll.u32 %s3, 4
      %s368 = int_to_ptr.hbm [resolvable:$true] %s367
      %370 = dma.vmem_to_hbm [thread:$0]  %s366, 128, %s368, [#allocation3]
    $region17: #{tpu_custom_call.1} parent=1 // pred_fallthru
      _
    // Predicated region
    $region18: #{tpu_custom_call.1} parent=1 // pred_check
      _
    $region19: #{tpu_custom_call.1} parent=1 // pred_check_branch
      %372 = sbr.rel (0) target = $region21
    $region20: #{tpu_custom_call.1} parent=1 // pred_region
      %374 = dma.done [#allocation3], 128
    $region21: #{tpu_custom_call.1} parent=1 // pred_fallthru
      _
    %375 = vsyncpa [#allocation3], 1

</llo_original>
